<compile_context>
chip_gen: v6e
topology: v6e:2x2x1
jax: 0.10.0
libtpu: 0.0.40
codegen_flags: <defaults>
</compile_context>

<pallas_src>
import jax
import jax.numpy as jnp
from jax.experimental import pallas as pl
from jax.experimental.pallas import tpu as pltpu

FEATURES = 8
NUM_LAYERS = 7          # the same Linear module applied 7 times
PACK = 16               # batch rows packed per 128-lane vector row
LANES = PACK * FEATURES  # 128


def _round_up(n: int, m: int) -> int:
    return ((n + m - 1) // m) * m


def _packed_kernel(wblk_ref, x_ref, o_ref):
    # wblk_ref: (128, 128) block-diagonal weight = kron(I16, (W^7).T), resident in VMEM
    # x_ref:    (TR, 128)  packed activations (16 batch rows of 8 features per vector row)
    # o_ref:    (TR, 128)  packed outputs
    o_ref[...] = jnp.dot(
        x_ref[...], wblk_ref[...], preferred_element_type=jnp.float32
    ).astype(o_ref.dtype)


def neural_network_forward(x, w):
    """Equivalent of NeuralNetwork.forward.

    x: (B, 8) float32
    w: (8, 8) float32, PyTorch Linear weight layout (out_features, in_features)
    """
    B, F = x.shape
    assert F == FEATURES and w.shape == (FEATURES, FEATURES)

    # Fold the 7 chained bias-free linears: y = x @ (W.T)^7.  Sequential multiplies keep
    # rounding close to the reference (binary exponentiation rounds differently).
    wt = w.T.astype(jnp.float32)
    mt = wt
    for _ in range(NUM_LAYERS - 1):
        mt = mt @ wt                                    # (W.T)^7, shape (8, 8)

    # 128x128 block-diagonal weight so the packed layout needs no relayout.
    wblk = jnp.kron(jnp.eye(PACK, dtype=jnp.float32), mt)   # (128, 128)

    # Pack 16 batch rows per 128-lane row (contiguous reshape == free). Pad B to a multiple
    # of 128 so the packed row count R is a multiple of 8 (sublane-friendly blocks).
    Bp = _round_up(B, LANES)
    xp = x if Bp == B else jnp.pad(x, ((0, Bp - B), (0, 0)))
    R = Bp // PACK
    xp = xp.reshape(R, LANES)                           # (R, 128), free view

    # Row tile: ~2 MiB (4096 x 128 f32). For small R, split into 2 grid steps (when cleanly
    # divisible) so the v7x megacore's second core gets work.
    if R > 4096:
        TR = 4096
    elif R >= 16 and R % 16 == 0:
        TR = R // 2
    else:
        TR = R
    grid = (pl.cdiv(R, TR),)

    cost = pl.CostEstimate(
        flops=2 * R * LANES * LANES,
        transcendentals=0,
        bytes_accessed=2 * R * LANES * 4 + LANES * LANES * 4,
    )

    yp = pl.pallas_call(
        _packed_kernel,
        out_shape=jax.ShapeDtypeStruct((R, LANES), x.dtype),
        grid=grid,
        in_specs=[
            pl.BlockSpec((LANES, LANES), lambda i: (0, 0)),   # Wblk, resident
            pl.BlockSpec((TR, LANES), lambda i: (i, 0)),      # packed x tile
        ],
        out_specs=pl.BlockSpec((TR, LANES), lambda i: (i, 0)),
        compiler_params=pltpu.CompilerParams(
            dimension_semantics=("parallel",)   # batch-parallel -> megacore shard on v7x
        ),
        cost_estimate=cost,
    )(wblk, xp)

    y = yp.reshape(Bp, FEATURES)                        # free contiguous reshape back
    return y[:B] if Bp != B else y


def reference_forward(x, w):
    y = x
    for _ in range(NUM_LAYERS):
        y = y @ w.T
    return y


if __name__ == "__main__":
    key = jax.random.PRNGKey(0)
    kx, kw = jax.random.split(key)

    # Deterministic parameter init, mimicking nn.Linear default U(-1/sqrt(in), 1/sqrt(in)).
    bound = 1.0 / (FEATURES ** 0.5)
    w = jax.random.uniform(kw, (FEATURES, FEATURES), jnp.float32, -bound, bound)

    B = 256  # small batch: packs to (16, 128), two (8, 128) lane-dense tiles
    x = jax.random.normal(kx, (B, FEATURES), jnp.float32)

    out = jax.block_until_ready(neural_network_forward(x, w))

    ref = reference_forward(x, w)
    assert out.shape == (B, FEATURES)
    assert jnp.allclose(out, ref, atol=1e-5, rtol=1e-4), "mismatch vs reference"

    print("KERNEL_OK")
</pallas_src>

<mosaic_0001>
module attributes {stable_mosaic.version = 11 : i64} {
  func.func @_packed_kernel(%arg0: i32, %arg1: memref<128x128xf32, #tpu.memory_space<vmem>>, %arg2: memref<8x128xf32, #tpu.memory_space<vmem>>, %arg3: memref<8x128xf32, #tpu.memory_space<vmem>>) attributes {dimension_semantics = [#tpu.dimension_semantics<parallel>], iteration_bounds = array<i64: 2>, scalar_prefetch = 0 : i64, scratch_operands = 0 : i64, tpu.core_type = #tpu.core_type<tc>, window_params = [{pipeline_mode = #tpu.pipeline_mode<synchronous>, transform_indices = @transform_0, window_bounds = array<i64: 128, 128>}, {transform_indices = @transform_1, window_bounds = array<i64: 8, 128>}, {transform_indices = @transform_2, window_bounds = array<i64: 8, 128>}]} {
    %c0 = arith.constant 0 : index
    %c0_0 = arith.constant 0 : index
    %0 = vector.load %arg2[%c0, %c0_0] : memref<8x128xf32, #tpu.memory_space<vmem>>, vector<8x128xf32>
    %c0_1 = arith.constant 0 : index
    %c0_2 = arith.constant 0 : index
    %1 = vector.load %arg1[%c0_1, %c0_2] : memref<128x128xf32, #tpu.memory_space<vmem>>, vector<128x128xf32>
    %cst = arith.constant dense<0.000000e+00> : vector<8x128xf32>
    %2 = tpu.matmul %0, %1, %cst {dimension_numbers = #tpu.dot_dimension_numbers<[1], [0], [0], [1], [0, 0, 1, 1], [], []>} : vector<8x128xf32>, vector<128x128xf32>, vector<8x128xf32> -> vector<8x128xf32>
    %c0_3 = arith.constant 0 : index
    %c0_4 = arith.constant 0 : index
    %3 = vector.load %arg3[%c0_3, %c0_4] : memref<8x128xf32, #tpu.memory_space<vmem>>, vector<8x128xf32>
    tpu.vector_store %arg3[%c0_3, %c0_4], %2 {strides = array<i32>} : memref<8x128xf32, #tpu.memory_space<vmem>>, vector<8x128xf32>,
    return
  }
  func.func @transform_0(%arg0: i32) -> (i32, i32) {
    %c0_i32 = arith.constant 0 : i32
    %c0_i32_0 = arith.constant 0 : i32
    %c0_i32_1 = arith.constant 0 : i32
    return %c0_i32, %c0_i32_0 : i32, i32
  }
  func.func @transform_1(%arg0: i32) -> (i32, i32) {
    %c0_i32 = arith.constant 0 : i32
    %c0_i32_0 = arith.constant 0 : i32
    return %arg0, %c0_i32 : i32, i32
  }
  func.func @transform_2(%arg0: i32) -> (i32, i32) {
    %c0_i32 = arith.constant 0 : i32
    %c0_i32_0 = arith.constant 0 : i32
    return %arg0, %c0_i32 : i32, i32
  }
}

</mosaic_0001>

<llo_original>
// kernel: tpu_custom_call.1
$region0: #{tpu_custom_call.1}
  #allocation0 [shape = 'u32[]', space=smem, size = 0x4, offset = 0x4, fixed_abs, tag = 'smem constant byte address 0x4 - core index']
  #allocation1 [shape = 'u32[144,128]{1,0:T(1,128)}', space=vmem, size = 0x12000, scoped, tag = 'internal scratch']
  %s0 = inlined_call_operand.hbm [shape: f32[128,128], index: 0, kind: input, shape index: {}]
  %s1 = inlined_call_operand.hbm [shape: f32[16,128], index: 1, kind: input, shape index: {}]
  %s2 = inlined_call_operand.hbm [shape: f32[16,128], index: 2, kind: output, shape index: {}]
  %s3 = sld [smem:[#allocation0]]
  $region49: #{tpu_custom_call.1} parent=0
    _
  %s5 = ssub.s32 1, %s3
  %s6 = scalar_select 0, %s5, %s3
  $region1: #{tpu_custom_call.1} parent=0
    #allocation2 [shape = 'u8[65536]{0}', space=vmem, size = 0x10000, scoped, tag = 'input window, operand 0, single buffered']
    #allocation3 [shape = 's32[2]{0}', space=sflag, size = 0x8, scoped, tag = 'scoped memory for tpu_custom_call.1']
    #allocation4 [shape = 's32[2]{0}', space=sflag, size = 0x8, scoped, tag = 'scoped memory for tpu_custom_call.1']
    #allocation5 [shape = 'u8[8192]{0}', space=vmem, size = 0x2000, scoped, tag = 'input window, operand 1']
    #allocation6 [shape = 's32[2]{0}', space=sflag, size = 0x8, scoped, tag = 'scoped memory for tpu_custom_call.1']
    #allocation7 [shape = 'u8[8192]{0}', space=vmem, size = 0x2000, scoped, tag = 'output window, operand 0']
    %7 = vsyncpa [#allocation3], 0
    %8 = vsyncpa [#allocation6], 0
    %s9 = scalar_lea.sflag [#allocation6], 1
    %10 = vsyncpa %s9, 0
    %11 = vsyncpa [#allocation4], 0
    %s12 = scalar_lea.sflag [#allocation4], 1
    %13 = vsyncpa %s12, 0
    loop: start=0, step=1, limit=4
    $region2: #{tpu_custom_call.1} parent=1 // loop_pre_header
      _
    $region3: #{tpu_custom_call.1} parent=1 // loop_header
      %s15 = sphi 0, %s19
      %p16 = scmp.ge.s32.totalorder %s15, 4
      %s23 = sphi 0, %s23
      %s25 = sphi 0, %s23
      %s26 = sphi 0, %s25
      %s40 = sphi 0, %s26
      %s46 = sphi 0, %s48
      %s49 = sphi 0, %s46
      %s50 = sphi 0, %s49
      %s66 = sphi 0, %s50
      %s72 = sphi 0, %s74
      %s75 = sphi 0, %s72
      %s76 = sphi 0, %s75
      %s92 = sphi 0, %s76
    $region4: #{tpu_custom_call.1} parent=1 // loop_header_branch
      %18 = sbr.rel (%p16) target = $region8
    $region5: #{tpu_custom_call.1} parent=1 // loop_body
      %s20 = ssub.s32 %s15, 1
      %s21 = ssub.s32 %s15, 2
      %s22 = sadd.s32 %s15, 1
      %s24 = sadd.s32 %s23, 1
      %p27 = scmp.eq.s32.totalorder %s15, 1
      %p28 = scmp.ne.s32.totalorder %s23, %s25
      %p29 = scmp.eq.s32.totalorder %s15, 0
      %p30 = por %p28, %p29
      %p31 = scmp.ne.s32.totalorder %s23, %s25
      %p32 = scmp.eq.s32.totalorder %s20, 1
      %p33 = por %p31, %p32
      %p34 = scmp.ne.s32.totalorder %s25, %s26
      %p35 = scmp.eq.s32.totalorder %s20, 0
      %p36 = por %p34, %p35
      %p37 = scmp.ne.s32.totalorder %s25, %s26
      %p38 = scmp.eq.s32.totalorder %s21, 1
      %p39 = por %p37, %p38
      %p41 = scmp.ne.s32.totalorder %s26, %s40
      %p42 = scmp.eq.s32.totalorder %s21, 0
      %p43 = por %p41, %p42
      %s44 = ssub.s32 %s15, %s22
      %p45 = scmp.eq.s32.totalorder %s44, 0
      %s47 = sadd.s32 %s46, 1
      %s48 = scalar_select %p45, %s46, %s47
      %p51 = pneg %p45
      %p52 = scmp.eq.s32.totalorder %s15, 1
      %p53 = por %p51, %p52
      %p54 = scmp.ne.s32.totalorder %s46, %s49
      %p55 = scmp.eq.s32.totalorder %s15, 0
      %p56 = por %p54, %p55
      %p57 = scmp.ne.s32.totalorder %s46, %s49
      %p58 = scmp.eq.s32.totalorder %s20, 1
      %p59 = por %p57, %p58
      %p60 = scmp.ne.s32.totalorder %s49, %s50
      %p61 = scmp.eq.s32.totalorder %s20, 0
      %p62 = por %p60, %p61
      %p63 = scmp.ne.s32.totalorder %s49, %s50
      %p64 = scmp.eq.s32.totalorder %s21, 1
      %p65 = por %p63, %p64
      %p67 = scmp.ne.s32.totalorder %s50, %s66
      %p68 = scmp.eq.s32.totalorder %s21, 0
      %p69 = por %p67, %p68
      %s70 = ssub.s32 %s15, %s22
      %p71 = scmp.eq.s32.totalorder %s70, 0
      %s73 = sadd.s32 %s72, 1
      %s74 = scalar_select %p71, %s72, %s73
      %p77 = pneg %p71
      %p78 = scmp.eq.s32.totalorder %s15, 1
      %p79 = por %p77, %p78
      %p80 = scmp.ne.s32.totalorder %s72, %s75
      %p81 = scmp.eq.s32.totalorder %s15, 0
      %p82 = por %p80, %p81
      %p83 = scmp.ne.s32.totalorder %s72, %s75
      %p84 = scmp.eq.s32.totalorder %s20, 1
      %p85 = por %p83, %p84
      %p86 = scmp.ne.s32.totalorder %s75, %s76
      %p87 = scmp.eq.s32.totalorder %s20, 0
      %p88 = por %p86, %p87
      %p89 = scmp.ne.s32.totalorder %s75, %s76
      %p90 = scmp.eq.s32.totalorder %s21, 1
      %p91 = por %p89, %p90
      %p93 = scmp.ne.s32.totalorder %s76, %s92
      %p94 = scmp.eq.s32.totalorder %s21, 0
      %p95 = por %p93, %p94
      %p96 = scmp.le.s32.totalorder 1, %s15
      %p97 = scmp.lt.s32.totalorder %s15, 3
      %p98 = pnand %p96, %p97
      %p99 = pneg %p98
      // Predicated region
      $region9: #{tpu_custom_call.1} parent=5 // pred_check
        _
      $region10: #{tpu_custom_call.1} parent=5 // pred_check_branch
        %101 = sbr.rel (%p98) target = $region12
      $region11: #{tpu_custom_call.1} parent=5 // pred_region
        %s102 = ssub.s32 %s15, 1
        // Predicated region
        $region13: #{tpu_custom_call.1} parent=11 // pred_check
          %p103 = pneg %p36
        $region14: #{tpu_custom_call.1} parent=11 // pred_check_branch
          %105 = sbr.rel (%p103) target = $region16
        $region15: #{tpu_custom_call.1} parent=11 // pred_region
          %s107 = ssub.s32 2048, 2048
          %108 = vsyncadd [#allocation3], %s107
          %s109 = sshll.u32 [#allocation2], 4
          %s110 = int_to_ptr.vmem [resolvable:$true] %s109
          %115 = dma.hbm_to_vmem [thread:$0]  %s0, 2048, %s110, [#allocation3], 128, 128, 8
        $region16: #{tpu_custom_call.1} parent=11 // pred_fallthru
          _
      $region12: #{tpu_custom_call.1} parent=5 // pred_fallthru
        _
      %p116 = scmp.lt.s32.totalorder %s15, 2
      // Predicated region
      $region17: #{tpu_custom_call.1} parent=5 // pred_check
        %p117 = pneg %p116
      $region18: #{tpu_custom_call.1} parent=5 // pred_check_branch
        %119 = sbr.rel (%p117) target = $region20
      $region19: #{tpu_custom_call.1} parent=5 // pred_region
        // Predicated region
        $region21: #{tpu_custom_call.1} parent=19 // pred_check
          %p120 = pneg %p56
        $region22: #{tpu_custom_call.1} parent=19 // pred_check_branch
          %122 = sbr.rel (%p120) target = $region24
        $region23: #{tpu_custom_call.1} parent=19 // pred_region
          %s123 = sand.u32 %s46, 1
          %s124 = scalar_lea.sflag [#allocation6], %s123
          %s125 = sand.u32 %s46, 1
          %s126 = smul.addr %s125, 8
          %s127 = scalar_lea.vmem [#allocation5], %s126
          %s129 = ssub.s32 128, 128
          %130 = vsyncadd %s124, %s129
          %s131 = smul.addr %s15, 128
          %s132 = scalar_lea.hbm %s1, %s131
          %s134 = sshll.u32 %s127, 4
          %s135 = int_to_ptr.vmem [resolvable:$true] %s134
          %137 = dma.hbm_to_vmem [thread:$0]  %s132, 128, %s135, %s124
        $region24: #{tpu_custom_call.1} parent=19 // pred_fallthru
          _
      $region20: #{tpu_custom_call.1} parent=5 // pred_fallthru
        _
      %p138 = scmp.le.s32.totalorder 1, %s15
      %p139 = scmp.lt.s32.totalorder %s15, 3
      %p140 = pnand %p138, %p139
      %p141 = pneg %p140
      // Predicated region
      $region25: #{tpu_custom_call.1} parent=5 // pred_check
        _
      $region26: #{tpu_custom_call.1} parent=5 // pred_check_branch
        %143 = sbr.rel (%p140) target = $region28
      $region27: #{tpu_custom_call.1} parent=5 // pred_region
        %s144 = ssub.s32 %s15, 1
        // Predicated region
        $region29: #{tpu_custom_call.1} parent=27 // pred_check
          %p145 = pneg %p36
        $region30: #{tpu_custom_call.1} parent=27 // pred_check_branch
          %147 = sbr.rel (%p145) target = $region32
        $region31: #{tpu_custom_call.1} parent=27 // pred_region
          %148 = dma.done [#allocation3], 2048
        $region32: #{tpu_custom_call.1} parent=27 // pred_fallthru
          _
        %s149 = sand.u32 %s49, 1
        %s150 = scalar_lea.sflag [#allocation6], %s149
        %s151 = sand.u32 %s49, 1
        %s152 = smul.addr %s151, 8
        %s153 = scalar_lea.vmem [#allocation5], %s152
        // Predicated region
        $region33: #{tpu_custom_call.1} parent=27 // pred_check
          %p154 = pneg %p62
        $region34: #{tpu_custom_call.1} parent=27 // pred_check_branch
          %156 = sbr.rel (%p154) target = $region36
        $region35: #{tpu_custom_call.1} parent=27 // pred_region
          %157 = dma.done %s150, 128
        $region36: #{tpu_custom_call.1} parent=27 // pred_fallthru
          _
        %p158 = pneg %p36
        %p159 = pneg %p33
        %s160 = sand.u32 %s49, 1
        %s161 = scalar_lea.sflag [#allocation6], %s160
        %s162 = sand.u32 %s49, 1
        %s163 = smul.addr %s162, 8
        %s164 = scalar_lea.vmem [#allocation5], %s163
        %p165 = pneg %p62
        %p166 = pneg %p59
        %p167 = pneg %p88
        %p168 = pneg %p85
        %s169 = sand.u32 %s75, 1
        %s170 = scalar_lea.sflag [#allocation4], %s169
        %s171 = sand.u32 %s75, 1
        %s172 = smul.addr %s171, 8
        %s173 = scalar_lea.vmem [#allocation7], %s172
        %v174 = vld [vmem:[%s153] sm:$0xff]
        %v175 = vld [vmem:[#allocation2] sm:$0xff]
        %v176 = vld [vmem:[#allocation2 + $0x8] sm:$0xff]
        %v177 = vld [vmem:[#allocation2 + $0x10] sm:$0xff]
        %v178 = vld [vmem:[#allocation2 + $0x18] sm:$0xff]
        %v179 = vld [vmem:[#allocation2 + $0x20] sm:$0xff]
        %v180 = vld [vmem:[#allocation2 + $0x28] sm:$0xff]
        %v181 = vld [vmem:[#allocation2 + $0x30] sm:$0xff]
        %v182 = vld [vmem:[#allocation2 + $0x38] sm:$0xff]
        %v183 = vld [vmem:[#allocation2 + $0x40] sm:$0xff]
        %v184 = vld [vmem:[#allocation2 + $0x48] sm:$0xff]
        %v185 = vld [vmem:[#allocation2 + $0x50] sm:$0xff]
        %v186 = vld [vmem:[#allocation2 + $0x58] sm:$0xff]
        %v187 = vld [vmem:[#allocation2 + $0x60] sm:$0xff]
        %v188 = vld [vmem:[#allocation2 + $0x68] sm:$0xff]
        %v189 = vld [vmem:[#allocation2 + $0x70] sm:$0xff]
        %v190 = vld [vmem:[#allocation2 + $0x78] sm:$0xff]
        %191 = vmatprep.subr.mxu0 0.0
        %192 = vmatpush1.msra.mxu0 %v190
        %193 = vmatprep.subr.mxu0 0.0
        %194 = vmatpush1.msra.mxu0 %v189
        %195 = vmatprep.subr.mxu0 0.0
        %196 = vmatpush1.msra.mxu0 %v188
        %197 = vmatprep.subr.mxu0 0.0
        %198 = vmatpush1.msra.mxu0 %v187
        %199 = vmatprep.subr.mxu0 0.0
        %200 = vmatpush1.msra.mxu0 %v186
        %201 = vmatprep.subr.mxu0 0.0
        %202 = vmatpush1.msra.mxu0 %v185
        %203 = vmatprep.subr.mxu0 0.0
        %204 = vmatpush1.msra.mxu0 %v184
        %205 = vmatprep.subr.mxu0 0.0
        %206 = vmatpush1.msra.mxu0 %v183
        %207 = vmatprep.subr.mxu0 0.0
        %208 = vmatpush1.msra.mxu0 %v182
        %209 = vmatprep.subr.mxu0 0.0
        %210 = vmatpush1.msra.mxu0 %v181
        %211 = vmatprep.subr.mxu0 0.0
        %212 = vmatpush1.msra.mxu0 %v180
        %213 = vmatprep.subr.mxu0 0.0
        %214 = vmatpush1.msra.mxu0 %v179
        %215 = vmatprep.subr.mxu0 0.0
        %216 = vmatpush1.msra.mxu0 %v178
        %217 = vmatprep.subr.mxu0 0.0
        %218 = vmatpush1.msra.mxu0 %v177
        %219 = vmatprep.subr.mxu0 0.0
        %220 = vmatpush1.msra.mxu0 %v176
        %221 = vmatprep.subr.mxu0 0.0
        %222 = vmatpush1.msra.mxu0 %v175
        %223 = vmatprep.subr.mxu0 0.0
        %224 = vmatpush2.msra.mxu0 0.0
        %225 = vmatprep.subr.mxu0 0.0
        %226 = vmatpush2.msra.mxu0 0.0
        %227 = vmatprep.subr.mxu0 0.0
        %228 = vmatpush2.msra.mxu0 0.0
        %229 = vmatprep.subr.mxu0 0.0
        %230 = vmatpush2.msra.mxu0 0.0
        %231 = vmatprep.subr.mxu0 0.0
        %232 = vmatpush2.msra.mxu0 0.0
        %233 = vmatprep.subr.mxu0 0.0
        %234 = vmatpush2.msra.mxu0 0.0
        %235 = vmatprep.subr.mxu0 0.0
        %236 = vmatpush2.msra.mxu0 0.0
        %237 = vmatprep.subr.mxu0 0.0
        %238 = vmatpush2.msra.mxu0 0.0
        %239 = vmatprep.subr.mxu0 0.0
        %240 = vmatpush2.msra.mxu0 0.0
        %241 = vmatprep.subr.mxu0 0.0
        %242 = vmatpush2.msra.mxu0 0.0
        %243 = vmatprep.subr.mxu0 0.0
        %244 = vmatpush2.msra.mxu0 0.0
        %245 = vmatprep.subr.mxu0 0.0
        %246 = vmatpush2.msra.mxu0 0.0
        %247 = vmatprep.subr.mxu0 0.0
        %248 = vmatpush2.msra.mxu0 0.0
        %249 = vmatprep.subr.mxu0 0.0
        %250 = vmatpush2.msra.mxu0 0.0
        %251 = vmatprep.subr.mxu0 0.0
        %252 = vmatpush2.msra.mxu0 0.0
        %253 = vmatprep.subr.mxu0 0.0
        %254 = vmatpush2.msra.mxu0 0.0
        %255 = vmatprep.mubr.f32.mxu0 0.0
        %256 = vmatmul.mubr.f32.gmra.mxu0 %v174
        %v257 = vpop.f32.mrf.mxu0
        %v258 = vadd.f32 0.0, %v257
        %v259 = vpop.f32.mrf.mxu0
        %260 = vdwg.mxu0
        %261 = vst [vmem:[%s173] sm:$0xff] %v258
        %s262 = sand.u32 %s75, 1
        %s263 = scalar_lea.sflag [#allocation4], %s262
        %s264 = sand.u32 %s75, 1
        %s265 = smul.addr %s264, 8
        %s266 = scalar_lea.vmem [#allocation7], %s265
        // Predicated region
        $region37: #{tpu_custom_call.1} parent=27 // pred_check
          %p267 = pneg %p85
        $region38: #{tpu_custom_call.1} parent=27 // pred_check_branch
          %269 = sbr.rel (%p267) target = $region40
        $region39: #{tpu_custom_call.1} parent=27 // pred_region
          %s271 = ssub.s32 128, 128
          %272 = vsyncadd %s263, %s271
          %s273 = smul.addr %s20, 128
          %s274 = scalar_lea.hbm %s2, %s273
          %s276 = sshll.u32 %s266, 4
          %s277 = int_to_ptr.vmem [resolvable:$true] %s276
          %279 = dma.vmem_to_hbm [thread:$0]  %s277, 128, %s274, %s263
        $region40: #{tpu_custom_call.1} parent=27 // pred_fallthru
          _
      $region28: #{tpu_custom_call.1} parent=5 // pred_fallthru
        _
      %p280 = scmp.le.s32.totalorder 2, %s15
      // Predicated region
      $region41: #{tpu_custom_call.1} parent=5 // pred_check
        %p281 = pneg %p280
      $region42: #{tpu_custom_call.1} parent=5 // pred_check_branch
        %283 = sbr.rel (%p281) target = $region44
      $region43: #{tpu_custom_call.1} parent=5 // pred_region
        %s284 = ssub.s32 %s15, 2
        // Predicated region
        $region45: #{tpu_custom_call.1} parent=43 // pred_check
          %p285 = pneg %p91
        $region46: #{tpu_custom_call.1} parent=43 // pred_check_branch
          %287 = sbr.rel (%p285) target = $region48
        $region47: #{tpu_custom_call.1} parent=43 // pred_region
          %s288 = sand.u32 %s76, 1
          %s289 = scalar_lea.sflag [#allocation4], %s288
          %s290 = sand.u32 %s76, 1
          %s291 = smul.addr %s290, 8
          %s292 = scalar_lea.vmem [#allocation7], %s291
          %293 = dma.done %s289, 128
        $region48: #{tpu_custom_call.1} parent=43 // pred_fallthru
          _
      $region44: #{tpu_custom_call.1} parent=5 // pred_fallthru
        _
    $region6: #{tpu_custom_call.1} parent=1 // loop_footer
      %s19 = sadd.s32 1, %s15
    $region7: #{tpu_custom_call.1} parent=1 // loop_footer_branch
      %14 = sbr.rel target = $region3
    $region8: #{tpu_custom_call.1} parent=1 // loop_exit
      _
    %294 = vsyncpa [#allocation3], 1
    %s295 = scalar_lea.sflag [#allocation3], 1
    %296 = vsyncpa %s295, 1
    %297 = vsyncpa [#allocation6], 1
    %s298 = scalar_lea.sflag [#allocation6], 1
    %299 = vsyncpa %s298, 1
    %300 = vsyncpa [#allocation4], 1
    %s301 = scalar_lea.sflag [#allocation4], 1
    %302 = vsyncpa %s301, 1

</llo_original>
